<compile_context>
chip_gen: v6e
topology: v6e:2x2x1
jax: 0.10.0
libtpu: 0.0.40
codegen_flags: <defaults>
</compile_context>

<pallas_src>
import jax
import jax.numpy as jnp
from jax.experimental import pallas as pl
from jax.experimental.pallas import tpu as pltpu


def planar_flow_kernel(scal_ref, v_ref, ufun_ref, z_ref, x_ref, logdet_ref):
    """Streams one (TB, N) batch tile of z.

    Per tile (pure VPU/XLU work, memory-bound):
        hidden = (M^T w_fun) . z + b
        x      = z + tanh(hidden) * u_fun
        logdet = log|1 + (u_fun^T M w_fun) * (1 - tanh^2(hidden))| + eps
    """
    b = scal_ref[0]          # scalar (SMEM)
    uMw = scal_ref[1]        # scalar (SMEM): u_fun^T M w_fun
    v = v_ref[...]           # (1, N) = (M^T w_fun)^T, lane-dense, grid-invariant
    u_fun = ufun_ref[...]    # (1, N), grid-invariant
    z = z_ref[...]           # (TB, N)

    # hidden = v . z  — VPU mul + lane reduce (kept off the MXU on purpose)
    hidden = jnp.sum(z * v, axis=-1, keepdims=True) + b      # (TB, 1)
    th = jnp.tanh(hidden)                                     # (TB, 1)

    # x = z + tanh(hidden) * u_fun : pure broadcasts, no transposes
    x_ref[...] = z + th * u_fun                               # (TB, N)

    # rank-1 log-det identity: u_fun^T M (h'*w_fun) = (u_fun^T M w_fun) * h'
    hprime = 1.0 - th * th                                    # (TB, 1)
    logdet_ref[...] = jnp.log(jnp.abs(1.0 + uMw * hprime) + 1e-15)


def planar_flow(z, Psi_r, M, u, w, b, *, max_tb=1024):
    """z: (B, N) -> (x (B, N), log_det (B,)).

    All z-independent math is done here (once per call) with O(N^2) matvecs;
    the Pallas kernel only does the streaming, batch-tiled part.
    """
    B, N = z.shape
    f32 = jnp.float32

    z = z.astype(f32)
    Psi32 = Psi_r.astype(f32)
    M32 = M.astype(f32)
    u = u.astype(f32).reshape(-1)
    w = w.astype(f32).reshape(-1)
    b_s = jnp.asarray(b, f32).reshape(())

    # ---- grid-invariant parameter math (hoisted out of the kernel) ----------
    u_fun1 = Psi32 @ u                     # (N,)
    w_fun = Psi32 @ w                      # (N,)
    Mu = M32 @ u_fun1                      # (N,)
    Mw = M32 @ w_fun                       # (N,)
    wu = w_fun @ Mu                        # scalar: w_fun . (M u_fun1)
    ww = w_fun @ Mw                        # scalar: w_fun . (M w_fun)
    # m(wu) = -1 + softplus(wu), overflow-safe
    m_wu = -1.0 + jnp.maximum(wu, 0.0) + jnp.log1p(jnp.exp(-jnp.abs(wu)))
    u_fun = u_fun1 + (m_wu - wu) * (w_fun / (ww + 1e-15))     # (N,)
    v = M32.T @ w_fun                      # (N,): hidden_j = v . z_j (exact)
    uMw = u_fun @ Mw                       # scalar: u_fun . (M w_fun)

    scal = jnp.stack([b_s, uMw])           # (2,) scalars -> SMEM
    v_row = v.reshape(1, N)
    ufun_row = u_fun.reshape(1, N)

    # ---- batch-tiled, pipelined streaming kernel -----------------------------
    # TB*N*4B per tile; TB<=1024 keeps the double-buffered working set well
    # under the scoped-VMEM limit on v5e/v6e/v7x. Small B => single full block.
    if B <= max_tb:
        TB = B                              # block dim == full array dim (allowed)
    else:
        TB = max_tb                         # multiple of 8; tail block masked
    grid = (pl.cdiv(B, TB),)

    x, logdet = pl.pallas_call(
        planar_flow_kernel,
        grid=grid,
        out_shape=(jax.ShapeDtypeStruct((B, N), f32),
                   jax.ShapeDtypeStruct((B, 1), f32)),
        in_specs=[
            pl.BlockSpec(memory_space=pltpu.MemorySpace.SMEM),   # (b, uMw)
            pl.BlockSpec((1, N), lambda i: (0, 0)),              # v (resident)
            pl.BlockSpec((1, N), lambda i: (0, 0)),              # u_fun (resident)
            pl.BlockSpec((TB, N), lambda i: (i, 0)),             # z tile
        ],
        out_specs=(
            pl.BlockSpec((TB, N), lambda i: (i, 0)),             # x tile
            pl.BlockSpec((TB, 1), lambda i: (i, 0)),             # log_det tile
        ),
        compiler_params=pltpu.CompilerParams(
            dimension_semantics=("parallel",)),
    )(scal, v_row, ufun_row, z)

    return x, logdet[:, 0]


def planar_flow_ref(z, Psi_r, M, u, w, b):
    """Pure-JAX reference mirroring the PyTorch forward, for verification."""
    z = z.astype(jnp.float32)
    u_fun1 = Psi_r @ u
    w_fun = Psi_r @ w
    wu = w_fun @ (M @ u_fun1)
    ww = w_fun @ (M @ w_fun)
    m_wu = -1.0 + jnp.log(1.0 + jnp.exp(wu))
    u_fun = u_fun1 + (m_wu - wu) * (w_fun / (ww + 1e-15))
    hidden = w_fun @ (M @ z.T) + b                                  # (B,)
    x = z + u_fun[None, :] * jnp.tanh(hidden)[:, None]
    psi = (1.0 - jnp.tanh(hidden) ** 2)[None, :] * w_fun[:, None]   # (N, B)
    log_det = jnp.log(jnp.abs(1.0 + u_fun @ (M @ psi)) + 1e-15)
    return x, log_det


if __name__ == "__main__":
    # Shapes consistent with the module: equ_nx=20 CG1 mesh -> N = 21*21 = 441
    # nodes, reduced basis m = 20; small batch for the demo.
    B, m_dim = 2, 20
    equ_nx = 20
    N = (equ_nx + 1) ** 2        # 441
    q = 0.1

    key = jax.random.PRNGKey(0)
    k_psi, k_M, k_u, k_w, k_b, k_z = jax.random.split(key, 6)

    # TODO(synk): original builds M from a FEniCS CG mesh + GaussianElliptic2
    # prior as a sparse CSR mass matrix; replaced by a dense synthetic SPD M.
    Psi_r = jax.random.normal(k_psi, (N, m_dim), dtype=jnp.float32)
    R = jax.random.normal(k_M, (N, N), dtype=jnp.float32)
    M = 0.01 * (R @ R.T) / N + jnp.eye(N, dtype=jnp.float32)

    # Parameters: q * U[0,1), as in the module's __init__.
    u = q * jax.random.uniform(k_u, (m_dim,), dtype=jnp.float32)
    w = q * jax.random.uniform(k_w, (m_dim,), dtype=jnp.float32)
    b = q * jax.random.uniform(k_b, (1,), dtype=jnp.float32)

    z = jax.random.normal(k_z, (B, N), dtype=jnp.float32)

    x, log_det = planar_flow(z, Psi_r, M, u, w, b)
    jax.block_until_ready((x, log_det))

    x_ref, log_det_ref = planar_flow_ref(z, Psi_r, M, u, w, b)
    assert x.shape == (B, N) and log_det.shape == (B,)
    assert jnp.allclose(x, x_ref, atol=1e-4, rtol=1e-4)
    assert jnp.allclose(log_det, log_det_ref, atol=1e-4, rtol=1e-4)

    print("KERNEL_OK")
</pallas_src>

<mosaic_0001>
module attributes {stable_mosaic.version = 11 : i64} {
  func.func @planar_flow_kernel(%arg0: i32, %arg1: memref<2xf32, #tpu.memory_space<smem>>, %arg2: memref<1x441xf32, #tpu.memory_space<vmem>>, %arg3: memref<1x441xf32, #tpu.memory_space<vmem>>, %arg4: memref<2x441xf32, #tpu.memory_space<vmem>>, %arg5: memref<2x441xf32, #tpu.memory_space<vmem>>, %arg6: memref<2x1xf32, #tpu.memory_space<vmem>>) attributes {dimension_semantics = [#tpu.dimension_semantics<parallel>], iteration_bounds = array<i64: 1>, scalar_prefetch = 0 : i64, scratch_operands = 0 : i64, tpu.core_type = #tpu.core_type<tc>, window_params = [{transform_indices = @transform_0, window_bounds = array<i64: 2>}, {pipeline_mode = #tpu.pipeline_mode<synchronous>, transform_indices = @transform_1, window_bounds = array<i64: 1, 441>}, {pipeline_mode = #tpu.pipeline_mode<synchronous>, transform_indices = @transform_2, window_bounds = array<i64: 1, 441>}, {transform_indices = @transform_3, window_bounds = array<i64: 2, 441>}, {transform_indices = @transform_4, window_bounds = array<i64: 2, 441>}, {transform_indices = @transform_5, window_bounds = array<i64: 2, 1>}]} {
    %c0 = arith.constant 0 : index
    %0 = memref.load %arg1[%c0] : memref<2xf32, #tpu.memory_space<smem>>
    %c1 = arith.constant 1 : index
    %1 = memref.load %arg1[%c1] : memref<2xf32, #tpu.memory_space<smem>>
    %c0_0 = arith.constant 0 : index
    %c0_1 = arith.constant 0 : index
    %2 = vector.load %arg2[%c0_0, %c0_1] : memref<1x441xf32, #tpu.memory_space<vmem>>, vector<1x441xf32>
    %c0_2 = arith.constant 0 : index
    %c0_3 = arith.constant 0 : index
    %3 = vector.load %arg3[%c0_2, %c0_3] : memref<1x441xf32, #tpu.memory_space<vmem>>, vector<1x441xf32>
    %c0_4 = arith.constant 0 : index
    %c0_5 = arith.constant 0 : index
    %4 = vector.load %arg4[%c0_4, %c0_5] : memref<2x441xf32, #tpu.memory_space<vmem>>, vector<2x441xf32>
    %5 = vector.broadcast %2 : vector<1x441xf32> to vector<2x441xf32>
    %6 = arith.mulf %4, %5 : vector<2x441xf32>
    %cst = arith.constant dense<0.000000e+00> : vector<2xf32>
    %7 = vector.multi_reduction <add>, %6, %cst [1] : vector<2x441xf32> to vector<2xf32>
    %8 = vector.shape_cast %7 : vector<2xf32> to vector<2x1xf32>
    %9 = vector.broadcast %0 : f32 to vector<2x1xf32>
    %10 = arith.addf %8, %9 : vector<2x1xf32>
    %11 = math.tanh %10 : vector<2x1xf32>
    %12 = vector.broadcast %11 : vector<2x1xf32> to vector<2x441xf32>
    %13 = vector.broadcast %3 : vector<1x441xf32> to vector<2x441xf32>
    %14 = arith.mulf %12, %13 : vector<2x441xf32>
    %15 = arith.addf %4, %14 : vector<2x441xf32>
    %c0_6 = arith.constant 0 : index
    %c0_7 = arith.constant 0 : index
    %16 = vector.load %arg5[%c0_6, %c0_7] : memref<2x441xf32, #tpu.memory_space<vmem>>, vector<2x441xf32>
    tpu.vector_store %arg5[%c0_6, %c0_7], %15 {strides = array<i32>} : memref<2x441xf32, #tpu.memory_space<vmem>>, vector<2x441xf32>,
    %17 = arith.mulf %11, %11 : vector<2x1xf32>
    %cst_8 = arith.constant 1.000000e+00 : f32
    %18 = vector.broadcast %cst_8 : f32 to vector<2x1xf32>
    %19 = arith.subf %18, %17 : vector<2x1xf32>
    %20 = vector.broadcast %1 : f32 to vector<2x1xf32>
    %21 = arith.mulf %20, %19 : vector<2x1xf32>
    %cst_9 = arith.constant 1.000000e+00 : f32
    %22 = vector.broadcast %cst_9 : f32 to vector<2x1xf32>
    %23 = arith.addf %22, %21 : vector<2x1xf32>
    %24 = math.absf %23 : vector<2x1xf32>
    %cst_10 = arith.constant 1.000000e-15 : f32
    %25 = vector.broadcast %cst_10 : f32 to vector<2x1xf32>
    %26 = arith.addf %24, %25 : vector<2x1xf32>
    %27 = math.log %26 : vector<2x1xf32>
    %c0_11 = arith.constant 0 : index
    %c0_12 = arith.constant 0 : index
    %28 = vector.load %arg6[%c0_11, %c0_12] : memref<2x1xf32, #tpu.memory_space<vmem>>, vector<2x1xf32>
    tpu.vector_store %arg6[%c0_11, %c0_12], %27 {strides = array<i32>} : memref<2x1xf32, #tpu.memory_space<vmem>>, vector<2x1xf32>,
    return
  }
  func.func @transform_0(%arg0: i32) -> i32 {
    %c0_i32 = arith.constant 0 : i32
    %c0_i32_0 = arith.constant 0 : i32
    return %c0_i32 : i32
  }
  func.func @transform_1(%arg0: i32) -> (i32, i32) {
    %c0_i32 = arith.constant 0 : i32
    %c0_i32_0 = arith.constant 0 : i32
    %c0_i32_1 = arith.constant 0 : i32
    return %c0_i32, %c0_i32_0 : i32, i32
  }
  func.func @transform_2(%arg0: i32) -> (i32, i32) {
    %c0_i32 = arith.constant 0 : i32
    %c0_i32_0 = arith.constant 0 : i32
    %c0_i32_1 = arith.constant 0 : i32
    return %c0_i32, %c0_i32_0 : i32, i32
  }
  func.func @transform_3(%arg0: i32) -> (i32, i32) {
    %c0_i32 = arith.constant 0 : i32
    %c0_i32_0 = arith.constant 0 : i32
    return %arg0, %c0_i32 : i32, i32
  }
  func.func @transform_4(%arg0: i32) -> (i32, i32) {
    %c0_i32 = arith.constant 0 : i32
    %c0_i32_0 = arith.constant 0 : i32
    return %arg0, %c0_i32 : i32, i32
  }
  func.func @transform_5(%arg0: i32) -> (i32, i32) {
    %c0_i32 = arith.constant 0 : i32
    %c0_i32_0 = arith.constant 0 : i32
    return %arg0, %c0_i32 : i32, i32
  }
}

</mosaic_0001>

<llo_original>
// kernel: tpu_custom_call.1
$region0: #{tpu_custom_call.1}
  #allocation0 [shape = 'u32[]', space=smem, size = 0x4, offset = 0x4, fixed_abs, tag = 'smem constant byte address 0x4 - core index']
  #allocation1 [shape = 'u32[144,128]{1,0:T(1,128)}', space=vmem, size = 0x12000, scoped, tag = 'internal scratch']
  %s0 = inlined_call_operand.hbm [shape: f32[2], index: 0, kind: input, shape index: {}]
  %s1 = inlined_call_operand.hbm [shape: f32[1,441], index: 1, kind: input, shape index: {}]
  %s2 = inlined_call_operand.hbm [shape: f32[1,441], index: 2, kind: input, shape index: {}]
  %s3 = inlined_call_operand.hbm [shape: f32[2,441], index: 3, kind: input, shape index: {}]
  %s4 = inlined_call_operand.hbm [shape: f32[2,441], index: 4, kind: output, shape index: {0}]
  %s5 = inlined_call_operand.vmem [shape: f32[2,1], index: 5, kind: output, shape index: {1}]
  %6 = xla_tuple %s4, %s5
  %s7 = sld [smem:[#allocation0]]
  $region50: #{tpu_custom_call.1} parent=0
    _
  %s9 = ssub.s32 1, %s7
  %s10 = scalar_select 0, %s9, %s7
  $region1: #{tpu_custom_call.1} parent=0
    #allocation2 [shape = 'u8[512]{0}', space=smem, size = 0x200, scoped, tag = 'input window, operand 0, single buffered']
    #allocation3 [shape = 's32[1]{0}', space=sflag, size = 0x4, scoped, tag = 'scoped memory for tpu_custom_call.1']
    #allocation4 [shape = 's32[1]{0}', space=sflag, size = 0x4, scoped, tag = 'scoped memory for tpu_custom_call.1']
    #allocation5 [shape = 's32[1]{0}', space=sflag, size = 0x4, scoped, tag = 'scoped memory for tpu_custom_call.1']
    #allocation6 [shape = 'u8[2048]{0}', space=vmem, size = 0x800, scoped, tag = 'input window, operand 1, single buffered']
    #allocation7 [shape = 'u8[2048]{0}', space=vmem, size = 0x800, scoped, tag = 'input window, operand 2, single buffered']
    #allocation8 [shape = 's32[1]{0}', space=sflag, size = 0x4, scoped, tag = 'scoped memory for tpu_custom_call.1']
    #allocation9 [shape = 'u8[4096]{0}', space=vmem, size = 0x1000, scoped, tag = 'input window, operand 3, single buffered']
    #allocation10 [shape = 'u8[4096]{0}', space=vmem, size = 0x1000, scoped, tag = 'output window, operand 0, single buffered']
    %11 = vsyncpa [#allocation5], 0
    %12 = vsyncpa [#allocation3], 0
    %13 = vsyncpa [#allocation8], 0
    %14 = vsyncpa [#allocation4], 0
    // Predicated region
    $region2: #{tpu_custom_call.1} parent=1 // pred_check
      _
    $region3: #{tpu_custom_call.1} parent=1 // pred_check_branch
      %16 = sbr.rel (0) target = $region5
    $region4: #{tpu_custom_call.1} parent=1 // pred_region
      %s18 = ssub.s32 16, 16
      %19 = vsyncadd [#allocation5], %s18
      %22 = dma.hbm_to_smem %s0, 16, [#allocation2], [#allocation5]
    $region5: #{tpu_custom_call.1} parent=1 // pred_fallthru
      _
    // Predicated region
    $region6: #{tpu_custom_call.1} parent=1 // pred_check
      _
    $region7: #{tpu_custom_call.1} parent=1 // pred_check_branch
      %24 = sbr.rel (0) target = $region9
    $region8: #{tpu_custom_call.1} parent=1 // pred_region
      %s26 = ssub.s32 64, 64
      %27 = vsyncadd [#allocation3], %s26
      %s29 = sshll.u32 [#allocation6], 4
      %s30 = int_to_ptr.vmem [resolvable:$true] %s29
      %32 = dma.hbm_to_vmem [thread:$0]  %s1, 64, %s30, [#allocation3]
    $region9: #{tpu_custom_call.1} parent=1 // pred_fallthru
      _
    // Predicated region
    $region10: #{tpu_custom_call.1} parent=1 // pred_check
      _
    $region11: #{tpu_custom_call.1} parent=1 // pred_check_branch
      %34 = sbr.rel (0) target = $region13
    $region12: #{tpu_custom_call.1} parent=1 // pred_region
      %s36 = ssub.s32 64, 64
      %37 = vsyncadd [#allocation8], %s36
      %s39 = sshll.u32 [#allocation7], 4
      %s40 = int_to_ptr.vmem [resolvable:$true] %s39
      %42 = dma.hbm_to_vmem [thread:$0]  %s2, 64, %s40, [#allocation8]
    $region13: #{tpu_custom_call.1} parent=1 // pred_fallthru
      _
    // Predicated region
    $region14: #{tpu_custom_call.1} parent=1 // pred_check
      _
    $region15: #{tpu_custom_call.1} parent=1 // pred_check_branch
      %44 = sbr.rel (0) target = $region17
    $region16: #{tpu_custom_call.1} parent=1 // pred_region
      %s46 = ssub.s32 128, 128
      %47 = vsyncadd [#allocation8], %s46
      %s49 = sshll.u32 [#allocation9], 4
      %s50 = int_to_ptr.vmem [resolvable:$true] %s49
      %52 = dma.hbm_to_vmem [thread:$0]  %s3, 128, %s50, [#allocation8]
    $region17: #{tpu_custom_call.1} parent=1 // pred_fallthru
      _
    // Predicated region
    $region18: #{tpu_custom_call.1} parent=1 // pred_check
      _
    $region19: #{tpu_custom_call.1} parent=1 // pred_check_branch
      %54 = sbr.rel (0) target = $region21
    $region20: #{tpu_custom_call.1} parent=1 // pred_region
      %55 = dma.done [#allocation5], 16
    $region21: #{tpu_custom_call.1} parent=1 // pred_fallthru
      _
    // Predicated region
    $region22: #{tpu_custom_call.1} parent=1 // pred_check
      _
    $region23: #{tpu_custom_call.1} parent=1 // pred_check_branch
      %57 = sbr.rel (0) target = $region25
    $region24: #{tpu_custom_call.1} parent=1 // pred_region
      %58 = dma.done [#allocation3], 64
    $region25: #{tpu_custom_call.1} parent=1 // pred_fallthru
      _
    // Predicated region
    $region26: #{tpu_custom_call.1} parent=1 // pred_check
      _
    $region27: #{tpu_custom_call.1} parent=1 // pred_check_branch
      %60 = sbr.rel (0) target = $region29
    $region28: #{tpu_custom_call.1} parent=1 // pred_region
      %61 = dma.done [#allocation8], 64
    $region29: #{tpu_custom_call.1} parent=1 // pred_fallthru
      _
    // Predicated region
    $region30: #{tpu_custom_call.1} parent=1 // pred_check
      _
    $region31: #{tpu_custom_call.1} parent=1 // pred_check_branch
      %63 = sbr.rel (0) target = $region33
    $region32: #{tpu_custom_call.1} parent=1 // pred_region
      %64 = dma.done [#allocation8], 128
    $region33: #{tpu_custom_call.1} parent=1 // pred_fallthru
      _
    %65 = sfence
    %s66 = sld [smem:[#allocation2]]
    %s67 = sld [smem:[#allocation2 + $0x1]]
    %v68 = vld [vmem:[#allocation6] sm:$0xf]
    %v69 = vld [vmem:[#allocation7] sm:$0xf]
    %v70 = vld [vmem:[#allocation9] sm:$0xff]
    %v72 = vlaneseq
    %v73 = vshrl.u32 %v72, 7
    %v74 = vsub.s32 0, %v73
    %v75 = vrot.slane %v68, %v74
    %v76 = vlaneseq
    %v77 = vshrl.u32 %v76, 7
    %v78 = vsub.s32 1, %v77
    %v79 = vrot.slane %v68, %v78
    %v80 = vlaneseq
    %v81 = vshrl.u32 %v80, 7
    %v82 = vsub.s32 2, %v81
    %v83 = vrot.slane %v68, %v82
    %v84 = vlaneseq
    %v85 = vshrl.u32 %v84, 7
    %v86 = vsub.s32 3, %v85
    %v87 = vrot.slane %v68, %v86
    %v88 = vcombine.low %v75, %v79
    %v89 = vcombine.low %v83, %v87
    %v91 = vunpack.c.l.s4 1983009808
    %v92 = vunpack.c.0.s8 %v91
    %v93 = vlaneseq
    %v94 = vshrl.u32 %v93, 7
    %v95 = vsub.s32 %v92, %v94
    %v96 = vrot.slane %v88, %v95
    %v98 = vunpack.c.l.s4 1983009808
    %v99 = vunpack.c.0.s8 %v98
    %v100 = vlaneseq
    %v101 = vshrl.u32 %v100, 7
    %v102 = vsub.s32 %v99, %v101
    %v103 = vrot.slane %v89, %v102
    %v104 = vcombine.low %v96, %v103
    %v106 = vmul.f32 %v70, %v104
    %v108 = vcombine.high %v106, %v106
    %v110 = vunpack.c.l.s4 1983009808
    %v111 = vunpack.c.0.s8 %v110
    %v112 = vlaneseq
    %v113 = vshrl.u32 %v112, 7
    %v114 = vsub.s32 %v111, %v113
    %v115 = vrot.slane %v106, %v114
    %v117 = vunpack.c.l.s4 1983009808
    %v118 = vunpack.c.0.s8 %v117
    %v119 = vlaneseq
    %v120 = vshrl.u32 %v119, 7
    %v121 = vsub.s32 %v118, %v120
    %v122 = vrot.slane %v108, %v121
    %v123 = vcombine.high %v115, %v115
    %v124 = vcombine.high %v122, %v122
    %vm129 = vcmask 1041408
    %v130 = vsel %vm129, %v115, 0.0
    %v131 = vsel %vm129, %v123, 0.0
    %v132 = vadd.f32 %v130, %v131
    %v133 = vsel %vm129, %v122, 0.0
    %v134 = vadd.f32 %v132, %v133
    %vm135 = vcmask 459776
    %v136 = vsel %vm135, %v124, 0.0
    %v137 = vadd.f32 %v134, %v136
    %138 = vadd.xlane.f32.xlu0 %v137
    %v139 = vpop.xlane.xlu0 %138
    %v140 = vstv %s66
    %v141 = vadd.f32 %v139, %v140
    %v142 = vtanh.pop %v141
    %v144 = vlaneseq
    %v145 = vshrl.u32 %v144, 7
    %v146 = vsub.s32 0, %v145
    %v147 = vrot.slane %v69, %v146
    %v148 = vlaneseq
    %v149 = vshrl.u32 %v148, 7
    %v150 = vsub.s32 1, %v149
    %v151 = vrot.slane %v69, %v150
    %v152 = vlaneseq
    %v153 = vshrl.u32 %v152, 7
    %v154 = vsub.s32 2, %v153
    %v155 = vrot.slane %v69, %v154
    %v156 = vlaneseq
    %v157 = vshrl.u32 %v156, 7
    %v158 = vsub.s32 3, %v157
    %v159 = vrot.slane %v69, %v158
    %v164 = vmul.f32 %v142, %v147
    %v165 = vmul.f32 %v142, %v151
    %v166 = vmul.f32 %v142, %v155
    %v167 = vmul.f32 %v142, %v159
    %v172 = vcombine.low %v164, %v165
    %v173 = vcombine.low %v166, %v167
    %v175 = vunpack.c.l.s4 1983009808
    %v176 = vunpack.c.0.s8 %v175
    %v177 = vlaneseq
    %v178 = vshrl.u32 %v177, 7
    %v179 = vsub.s32 %v176, %v178
    %v180 = vrot.slane %v172, %v179
    %v182 = vunpack.c.l.s4 1983009808
    %v183 = vunpack.c.0.s8 %v182
    %v184 = vlaneseq
    %v185 = vshrl.u32 %v184, 7
    %v186 = vsub.s32 %v183, %v185
    %v187 = vrot.slane %v173, %v186
    %v188 = vcombine.low %v180, %v187
    %v190 = vadd.f32 %v70, %v188
    %vm191 = vcmask 1043458
    %vm192 = vmor %vm191, %vm129
    %vm193 = vcmask 1045508
    %vm194 = vmor %vm193, %vm192
    %vm195 = vcmask 465926
    %vm196 = vmor %vm195, %vm194
    %197 = vst.msk [vmem:[#allocation10] sm:$0xff] %vm196, %v190
    %v198 = vmul.f32 %v142, %v142
    %v199 = vsub.f32 1.0, %v198
    %v200 = vstv %s67
    %v201 = vmul.f32 %v200, %v199
    %v202 = vadd.f32 %v201, 1.0
    %v203 = vand.u32 2147483647, %v202
    %v204 = vadd.f32 %v203, 1e-15
    %v205 = vlog2.pop %v204
    %v206 = vmul.f32 %v205, 0.6931472
    %vm207 = vcmask 1024
    %208 = vst.msk [vmem:[%s5] sm:$0x3] %vm207, %v206
    // Predicated region
    $region34: #{tpu_custom_call.1} parent=1 // pred_check
      _
    $region35: #{tpu_custom_call.1} parent=1 // pred_check_branch
      %210 = sbr.rel (0) target = $region37
    $region36: #{tpu_custom_call.1} parent=1 // pred_region
      %s212 = ssub.s32 128, 128
      %213 = vsyncadd [#allocation4], %s212
      %s215 = sshll.u32 [#allocation10], 4
      %s216 = int_to_ptr.vmem [resolvable:$true] %s215
      %218 = dma.vmem_to_hbm [thread:$0]  %s216, 128, %s4, [#allocation4]
    $region37: #{tpu_custom_call.1} parent=1 // pred_fallthru
      _
    // Predicated region
    $region38: #{tpu_custom_call.1} parent=1 // pred_check
      _
    $region39: #{tpu_custom_call.1} parent=1 // pred_check_branch
      %220 = sbr.rel (0) target = $region41
    $region40: #{tpu_custom_call.1} parent=1 // pred_region
      _
    $region41: #{tpu_custom_call.1} parent=1 // pred_fallthru
      _
    // Predicated region
    $region42: #{tpu_custom_call.1} parent=1 // pred_check
      _
    $region43: #{tpu_custom_call.1} parent=1 // pred_check_branch
      %222 = sbr.rel (0) target = $region45
    $region44: #{tpu_custom_call.1} parent=1 // pred_region
      %223 = dma.done [#allocation4], 128
    $region45: #{tpu_custom_call.1} parent=1 // pred_fallthru
      _
    // Predicated region
    $region46: #{tpu_custom_call.1} parent=1 // pred_check
      _
    $region47: #{tpu_custom_call.1} parent=1 // pred_check_branch
      %225 = sbr.rel (0) target = $region49
    $region48: #{tpu_custom_call.1} parent=1 // pred_region
      _
    $region49: #{tpu_custom_call.1} parent=1 // pred_fallthru
      _
    %226 = vsyncpa [#allocation3], 1
    %227 = vsyncpa [#allocation8], 1
    %228 = vsyncpa [#allocation4], 1
    %229 = vsyncpa [#allocation5], 1

</llo_original>
